<compile_context>
chip_gen: v7x
topology: tpu7x:2x2x1
jax: 0.10.0
libtpu: 0.0.40
codegen_flags: <defaults>
</compile_context>

<pallas_src>
import functools

import jax
import jax.numpy as jnp
from jax.experimental import pallas as pl
from jax.experimental.pallas import tpu as pltpu


def _round_up(x: int, m: int) -> int:
    return ((x + m - 1) // m) * m


def _highway_kernel(x_ref, w_ref, b_ref, *rest,
                    p_dropout: float, use_dropout: bool):
    """One fused matmul -> split into proj/gate -> highway -> (optional) dropout."""
    if use_dropout:
        u_ref, o_ref = rest
    else:
        (o_ref,) = rest

    x = x_ref[...]                       # keep native dtype for the MXU operands
    e = x.shape[-1]                      # padded feature width (multiple of 128)

    # Fused projection: y = x @ [Wp | Wg] + [bp | bg]   -> (tile_m, 2E)
    y = jnp.dot(x, w_ref[...], preferred_element_type=jnp.float32) + b_ref[...]

    proj = jnp.maximum(y[:, :e], 0.0)            # relu(x @ Wp + bp)
    gate = jax.nn.sigmoid(y[:, e:])              # sigmoid(x @ Wg + bg)

    x_f32 = x.astype(jnp.float32)
    hwy = gate * proj + (1.0 - gate) * x_f32

    if use_dropout:
        keep = u_ref[...] >= jnp.float32(p_dropout)
        hwy = jnp.where(keep, hwy * (1.0 / (1.0 - p_dropout)), 0.0)

    o_ref[...] = hwy.astype(o_ref.dtype)


def highway_forward(x, w_proj, b_proj, w_gate, b_gate, *,
                    p_dropout: float = 0.0, training: bool = False,
                    rng_key=None, tile_m: int = 256):
    """x: (N, E).  w_*: (E, E) in PyTorch (out, in) layout.  b_*: (E,)."""
    N, E = x.shape

    # --- pad to TPU-friendly shapes -----------------------------------------
    Ep = _round_up(E, 128)                               # lane-dense feature dim
    tile_m_eff = _round_up(max(8, min(tile_m, _round_up(N, 8))), 8)
    Np = _round_up(N, tile_m_eff)                        # rows divisible by tile

    x_p = jnp.pad(x, ((0, Np - N), (0, Ep - E)))

    def prep_w(w):
        # torch (out, in) -> transposed (in, out), zero-padded to (Ep, Ep)
        return jnp.pad(w.T, ((0, Ep - E), (0, Ep - E)))

    w_cat = jnp.concatenate([prep_w(w_proj), prep_w(w_gate)], axis=1)   # (Ep, 2Ep)
    b_cat = jnp.concatenate([jnp.pad(b_proj, (0, Ep - E)),
                             jnp.pad(b_gate, (0, Ep - E))])
    b_cat = b_cat.reshape(1, 2 * Ep).astype(jnp.float32)                # (1, 2Ep)

    use_dropout = bool(training) and float(p_dropout) > 0.0

    inputs = [x_p, w_cat, b_cat]
    in_specs = [
        pl.BlockSpec((tile_m_eff, Ep), lambda i: (i, 0)),   # x tile (streamed)
        pl.BlockSpec((Ep, 2 * Ep),     lambda i: (0, 0)),   # fused weights (resident)
        pl.BlockSpec((1, 2 * Ep),      lambda i: (0, 0)),   # fused bias (resident)
    ]
    if use_dropout:
        if rng_key is None:
            rng_key = jax.random.PRNGKey(0)
        u = jax.random.uniform(rng_key, (Np, Ep), dtype=jnp.float32)
        inputs.append(u)
        in_specs.append(pl.BlockSpec((tile_m_eff, Ep), lambda i: (i, 0)))

    # --- VMEM budget (double-buffered tiles + resident weights + headroom) ---
    vmem_est = 4 * (2 * tile_m_eff * Ep              # x tile x2
                    + 2 * tile_m_eff * Ep            # out tile x2
                    + (2 * tile_m_eff * Ep if use_dropout else 0)
                    + 2 * Ep * (2 * Ep)              # fused weight x2
                    + 2 * (2 * Ep)                   # fused bias x2
                    + 4 * tile_m_eff * Ep)           # f32 intermediates
    vmem_limit = int(min(max(2 * vmem_est, 32 * 2**20), 56 * 2**20))

    kernel = functools.partial(_highway_kernel,
                               p_dropout=float(p_dropout),
                               use_dropout=use_dropout)

    out = pl.pallas_call(
        kernel,
        out_shape=jax.ShapeDtypeStruct((Np, Ep), x.dtype),
        grid=(Np // tile_m_eff,),
        in_specs=in_specs,
        out_specs=pl.BlockSpec((tile_m_eff, Ep), lambda i: (i, 0)),
        compiler_params=pltpu.CompilerParams(
            dimension_semantics=("parallel",),       # rows independent -> 2 TCs on v7x
            vmem_limit_bytes=vmem_limit),
    )(*inputs)

    return out[:N, :E]


def highway_reference(x, w_proj, b_proj, w_gate, b_gate):
    """Pure-JAX reference (eval mode: dropout is identity)."""
    proj = jax.nn.relu(x @ w_proj.T + b_proj)
    gate = jax.nn.sigmoid(x @ w_gate.T + b_gate)
    return gate * proj + (1.0 - gate) * x


if __name__ == "__main__":
    word_embed_size = 32   # E
    n_words = 64           # N (e.g. batch * max_sentence_length)
    p_dropout = 0.3

    key = jax.random.PRNGKey(0)
    kx, kwp, kbp, kwg, kbg, kdrop = jax.random.split(key, 6)

    # Deterministic synthetic parameters (PyTorch nn.Linear shapes: (out, in)).
    bound = 1.0 / (word_embed_size ** 0.5)
    x = jax.random.normal(kx, (n_words, word_embed_size), dtype=jnp.float32)
    w_proj = jax.random.uniform(kwp, (word_embed_size, word_embed_size),
                                minval=-bound, maxval=bound, dtype=jnp.float32)
    b_proj = jax.random.uniform(kbp, (word_embed_size,),
                                minval=-bound, maxval=bound, dtype=jnp.float32)
    w_gate = jax.random.uniform(kwg, (word_embed_size, word_embed_size),
                                minval=-bound, maxval=bound, dtype=jnp.float32)
    b_gate = jax.random.uniform(kbg, (word_embed_size,),
                                minval=-bound, maxval=bound, dtype=jnp.float32)

    # Eval mode (dropout identity) -> checkable against the pure-JAX reference.
    out = highway_forward(x, w_proj, b_proj, w_gate, b_gate,
                          p_dropout=p_dropout, training=False)
    out = jax.block_until_ready(out)

    ref = highway_reference(x, w_proj, b_proj, w_gate, b_gate)
    assert out.shape == (n_words, word_embed_size)
    assert jnp.allclose(out, ref, atol=1e-5, rtol=1e-5), "mismatch vs reference"

    # Training mode: exercise the dropout path (mask from jax.random, inverted
    # dropout scaling).  Each element is either 0 or ref/(1-p).
    out_train = jax.block_until_ready(
        highway_forward(x, w_proj, b_proj, w_gate, b_gate,
                        p_dropout=p_dropout, training=True, rng_key=kdrop))
    assert out_train.shape == (n_words, word_embed_size)
    scaled = ref / (1.0 - p_dropout)
    ok = jnp.isclose(out_train, 0.0, atol=1e-6) | jnp.isclose(out_train, scaled,
                                                              atol=1e-5, rtol=1e-5)
    assert bool(jnp.all(ok)), "dropout output is not {0, ref/(1-p)}"

    print("KERNEL_OK")
</pallas_src>

<mosaic_0001>
module attributes {stable_mosaic.version = 11 : i64} {
  func.func @_highway_kernel(%arg0: i32, %arg1: memref<64x128xf32, #tpu.memory_space<vmem>>, %arg2: memref<128x256xf32, #tpu.memory_space<vmem>>, %arg3: memref<1x256xf32, #tpu.memory_space<vmem>>, %arg4: memref<64x128xf32, #tpu.memory_space<vmem>>) attributes {dimension_semantics = [#tpu.dimension_semantics<parallel>], iteration_bounds = array<i64: 1>, scalar_prefetch = 0 : i64, scratch_operands = 0 : i64, tpu.core_type = #tpu.core_type<tc>, window_params = [{transform_indices = @transform_0, window_bounds = array<i64: 64, 128>}, {pipeline_mode = #tpu.pipeline_mode<synchronous>, transform_indices = @transform_1, window_bounds = array<i64: 128, 256>}, {pipeline_mode = #tpu.pipeline_mode<synchronous>, transform_indices = @transform_2, window_bounds = array<i64: 1, 256>}, {transform_indices = @transform_3, window_bounds = array<i64: 64, 128>}]} {
    %c0 = arith.constant 0 : index
    %c0_0 = arith.constant 0 : index
    %0 = vector.load %arg1[%c0, %c0_0] : memref<64x128xf32, #tpu.memory_space<vmem>>, vector<64x128xf32>
    %c0_1 = arith.constant 0 : index
    %c0_2 = arith.constant 0 : index
    %1 = vector.load %arg2[%c0_1, %c0_2] : memref<128x256xf32, #tpu.memory_space<vmem>>, vector<128x256xf32>
    %cst = arith.constant dense<0.000000e+00> : vector<64x256xf32>
    %2 = tpu.matmul %0, %1, %cst {dimension_numbers = #tpu.dot_dimension_numbers<[1], [0], [0], [1], [0, 0, 1, 1], [], []>} : vector<64x128xf32>, vector<128x256xf32>, vector<64x256xf32> -> vector<64x256xf32>
    %c0_3 = arith.constant 0 : index
    %c0_4 = arith.constant 0 : index
    %3 = vector.load %arg3[%c0_3, %c0_4] : memref<1x256xf32, #tpu.memory_space<vmem>>, vector<1x256xf32>
    %4 = vector.broadcast %3 : vector<1x256xf32> to vector<64x256xf32>
    %5 = arith.addf %2, %4 : vector<64x256xf32>
    %6 = vector.extract_strided_slice %5 {offsets = [0, 0], sizes = [64, 128], strides = [1, 1]} : vector<64x256xf32> to vector<64x128xf32>
    %cst_5 = arith.constant 0.000000e+00 : f32
    %7 = vector.broadcast %cst_5 : f32 to vector<64x128xf32>
    %8 = arith.maximumf %6, %7 : vector<64x128xf32>
    %9 = vector.extract_strided_slice %5 {offsets = [0, 128], sizes = [64, 128], strides = [1, 1]} : vector<64x256xf32> to vector<64x128xf32>
    %10 = arith.negf %9 : vector<64x128xf32>
    %11 = math.exp %10 : vector<64x128xf32>
    %cst_6 = arith.constant 1.000000e+00 : f32
    %12 = vector.broadcast %cst_6 : f32 to vector<64x128xf32>
    %13 = arith.addf %12, %11 : vector<64x128xf32>
    %14 = arith.divf %12, %13 : vector<64x128xf32>
    %15 = arith.mulf %14, %8 : vector<64x128xf32>
    %cst_7 = arith.constant 1.000000e+00 : f32
    %16 = vector.broadcast %cst_7 : f32 to vector<64x128xf32>
    %17 = arith.subf %16, %14 : vector<64x128xf32>
    %18 = arith.mulf %17, %0 : vector<64x128xf32>
    %19 = arith.addf %15, %18 : vector<64x128xf32>
    %c0_8 = arith.constant 0 : index
    %c0_9 = arith.constant 0 : index
    %20 = vector.load %arg4[%c0_8, %c0_9] : memref<64x128xf32, #tpu.memory_space<vmem>>, vector<64x128xf32>
    tpu.vector_store %arg4[%c0_8, %c0_9], %19 {strides = array<i32>} : memref<64x128xf32, #tpu.memory_space<vmem>>, vector<64x128xf32>,
    return
  }
  func.func @transform_0(%arg0: i32) -> (i32, i32) {
    %c0_i32 = arith.constant 0 : i32
    %c0_i32_0 = arith.constant 0 : i32
    return %arg0, %c0_i32 : i32, i32
  }
  func.func @transform_1(%arg0: i32) -> (i32, i32) {
    %c0_i32 = arith.constant 0 : i32
    %c0_i32_0 = arith.constant 0 : i32
    %c0_i32_1 = arith.constant 0 : i32
    return %c0_i32, %c0_i32_0 : i32, i32
  }
  func.func @transform_2(%arg0: i32) -> (i32, i32) {
    %c0_i32 = arith.constant 0 : i32
    %c0_i32_0 = arith.constant 0 : i32
    %c0_i32_1 = arith.constant 0 : i32
    return %c0_i32, %c0_i32_0 : i32, i32
  }
  func.func @transform_3(%arg0: i32) -> (i32, i32) {
    %c0_i32 = arith.constant 0 : i32
    %c0_i32_0 = arith.constant 0 : i32
    return %arg0, %c0_i32 : i32, i32
  }
}

</mosaic_0001>

<llo_original>
// kernel: tpu_custom_call.1
$region0: #{tpu_custom_call.1}
  #allocation0 [shape = 'u32[]', space=smem, size = 0x4, offset = 0x4, fixed_abs, tag = 'smem constant byte address 0x4 - core index']
  #allocation1 [shape = 'u32[144,128]{1,0:T(1,128)}', space=vmem, size = 0x12000, scoped, tag = 'internal scratch']
  %s0 = inlined_call_operand.hbm [shape: f32[64,128], index: 0, kind: input, shape index: {}]
  %s1 = inlined_call_operand.hbm [shape: f32[128,256], index: 1, kind: input, shape index: {}]
  %s2 = inlined_call_operand.vmem [shape: f32[1,256], index: 2, kind: input, shape index: {}]
  %s3 = inlined_call_operand.hbm [shape: f32[64,128], index: 3, kind: output, shape index: {}]
  %s4 = sld [smem:[#allocation0]]
  $region30: #{tpu_custom_call.1} parent=0
    _
  %s6 = ssub.s32 1, %s4
  %s7 = scalar_select 0, %s6, %s4
  $region1: #{tpu_custom_call.1} parent=0
    #allocation2 [shape = 'u8[32768]{0}', space=vmem, size = 0x8000, scoped, tag = 'input window, operand 0, single buffered']
    #allocation3 [shape = 's32[1]{0}', space=sflag, size = 0x4, scoped, tag = 'scoped memory for tpu_custom_call.1']
    #allocation4 [shape = 's32[1]{0}', space=sflag, size = 0x4, scoped, tag = 'scoped memory for tpu_custom_call.1']
    #allocation5 [shape = 'u8[131072]{0}', space=vmem, size = 0x20000, scoped, tag = 'input window, operand 1, single buffered']
    #allocation6 [shape = 's32[1]{0}', space=sflag, size = 0x4, scoped, tag = 'scoped memory for tpu_custom_call.1']
    #allocation7 [shape = 'u8[32768]{0}', space=vmem, size = 0x8000, scoped, tag = 'output window, operand 0, single buffered']
    %8 = vsyncpa [#allocation3], 0
    %9 = vsyncpa [#allocation6], 0
    %10 = vsyncpa [#allocation4], 0
    // Predicated region
    $region2: #{tpu_custom_call.1} parent=1 // pred_check
      _
    $region3: #{tpu_custom_call.1} parent=1 // pred_check_branch
      %12 = sbr.rel (0) target = $region5
    $region4: #{tpu_custom_call.1} parent=1 // pred_region
      %s14 = ssub.s32 1024, 1024
      %15 = vsyncadd [#allocation3], %s14
      %s16 = sshll.u32 [#allocation2], 4
      %s17 = int_to_ptr.vmem [resolvable:$true] %s16
      %22 = dma.hbm_to_vmem [thread:$0]  %s0, 1024, %s17, [#allocation3], 128, 128, 8
    $region5: #{tpu_custom_call.1} parent=1 // pred_fallthru
      _
    // Predicated region
    $region6: #{tpu_custom_call.1} parent=1 // pred_check
      _
    $region7: #{tpu_custom_call.1} parent=1 // pred_check_branch
      %24 = sbr.rel (0) target = $region9
    $region8: #{tpu_custom_call.1} parent=1 // pred_region
      %s26 = ssub.s32 4096, 4096
      %27 = vsyncadd [#allocation6], %s26
      %s28 = sshll.u32 [#allocation5], 4
      %s29 = int_to_ptr.vmem [resolvable:$true] %s28
      %34 = dma.hbm_to_vmem [thread:$0]  %s1, 4096, %s29, [#allocation6], 256, 256, 16
    $region9: #{tpu_custom_call.1} parent=1 // pred_fallthru
      _
    // Predicated region
    $region10: #{tpu_custom_call.1} parent=1 // pred_check
      _
    $region11: #{tpu_custom_call.1} parent=1 // pred_check_branch
      %36 = sbr.rel (0) target = $region13
    $region12: #{tpu_custom_call.1} parent=1 // pred_region
      _
    $region13: #{tpu_custom_call.1} parent=1 // pred_fallthru
      _
    // Predicated region
    $region14: #{tpu_custom_call.1} parent=1 // pred_check
      _
    $region15: #{tpu_custom_call.1} parent=1 // pred_check_branch
      %38 = sbr.rel (0) target = $region17
    $region16: #{tpu_custom_call.1} parent=1 // pred_region
      %39 = dma.done [#allocation3], 1024
    $region17: #{tpu_custom_call.1} parent=1 // pred_fallthru
      _
    // Predicated region
    $region18: #{tpu_custom_call.1} parent=1 // pred_check
      _
    $region19: #{tpu_custom_call.1} parent=1 // pred_check_branch
      %41 = sbr.rel (0) target = $region21
    $region20: #{tpu_custom_call.1} parent=1 // pred_region
      %42 = dma.done [#allocation6], 4096
    $region21: #{tpu_custom_call.1} parent=1 // pred_fallthru
      _
    %v43 = vld [vmem:[#allocation2] sm:$0xff]
    %v44 = vld [vmem:[#allocation2 + $0x8] sm:$0xff]
    %v45 = vld [vmem:[#allocation2 + $0x10] sm:$0xff]
    %v46 = vld [vmem:[#allocation2 + $0x18] sm:$0xff]
    %v47 = vld [vmem:[#allocation2 + $0x20] sm:$0xff]
    %v48 = vld [vmem:[#allocation2 + $0x28] sm:$0xff]
    %v49 = vld [vmem:[#allocation2 + $0x30] sm:$0xff]
    %v50 = vld [vmem:[#allocation2 + $0x38] sm:$0xff]
    %v51 = vld [vmem:[#allocation5] sm:$0xff]
    %v52 = vld [vmem:[#allocation5 + $0x8] sm:$0xff]
    %v53 = vld [vmem:[#allocation5 + $0x10] sm:$0xff]
    %v54 = vld [vmem:[#allocation5 + $0x18] sm:$0xff]
    %v55 = vld [vmem:[#allocation5 + $0x20] sm:$0xff]
    %v56 = vld [vmem:[#allocation5 + $0x28] sm:$0xff]
    %v57 = vld [vmem:[#allocation5 + $0x30] sm:$0xff]
    %v58 = vld [vmem:[#allocation5 + $0x38] sm:$0xff]
    %v59 = vld [vmem:[#allocation5 + $0x40] sm:$0xff]
    %v60 = vld [vmem:[#allocation5 + $0x48] sm:$0xff]
    %v61 = vld [vmem:[#allocation5 + $0x50] sm:$0xff]
    %v62 = vld [vmem:[#allocation5 + $0x58] sm:$0xff]
    %v63 = vld [vmem:[#allocation5 + $0x60] sm:$0xff]
    %v64 = vld [vmem:[#allocation5 + $0x68] sm:$0xff]
    %v65 = vld [vmem:[#allocation5 + $0x70] sm:$0xff]
    %v66 = vld [vmem:[#allocation5 + $0x78] sm:$0xff]
    %v67 = vld [vmem:[#allocation5 + $0x80] sm:$0xff]
    %v68 = vld [vmem:[#allocation5 + $0x88] sm:$0xff]
    %v69 = vld [vmem:[#allocation5 + $0x90] sm:$0xff]
    %v70 = vld [vmem:[#allocation5 + $0x98] sm:$0xff]
    %v71 = vld [vmem:[#allocation5 + $0xa0] sm:$0xff]
    %v72 = vld [vmem:[#allocation5 + $0xa8] sm:$0xff]
    %v73 = vld [vmem:[#allocation5 + $0xb0] sm:$0xff]
    %v74 = vld [vmem:[#allocation5 + $0xb8] sm:$0xff]
    %v75 = vld [vmem:[#allocation5 + $0xc0] sm:$0xff]
    %v76 = vld [vmem:[#allocation5 + $0xc8] sm:$0xff]
    %v77 = vld [vmem:[#allocation5 + $0xd0] sm:$0xff]
    %v78 = vld [vmem:[#allocation5 + $0xd8] sm:$0xff]
    %v79 = vld [vmem:[#allocation5 + $0xe0] sm:$0xff]
    %v80 = vld [vmem:[#allocation5 + $0xe8] sm:$0xff]
    %v81 = vld [vmem:[#allocation5 + $0xf0] sm:$0xff]
    %v82 = vld [vmem:[#allocation5 + $0xf8] sm:$0xff]
    %v83 = vld [vmem:[%s2] sm:$0x3]
    %v85 = vlaneseq
    %v86 = vshrl.u32 %v85, 7
    %v87 = vsub.s32 0, %v86
    %v88 = vrot.slane %v83, %v87
    %v89 = vlaneseq
    %v90 = vshrl.u32 %v89, 7
    %v91 = vsub.s32 1, %v90
    %v92 = vrot.slane %v83, %v91
    %95 = vmatprep.subr.mxu0 %v52
    %96 = vmatpush1.msra.mxu0 %v51
    %97 = vmatprep.subr.mxu0 %v54
    %98 = vmatpush1.msra.mxu0 %v53
    %99 = vmatprep.subr.mxu0 %v56
    %100 = vmatpush1.msra.mxu0 %v55
    %101 = vmatprep.subr.mxu0 %v58
    %102 = vmatpush1.msra.mxu0 %v57
    %103 = vmatprep.subr.mxu0 %v60
    %104 = vmatpush1.msra.mxu0 %v59
    %105 = vmatprep.subr.mxu0 %v62
    %106 = vmatpush1.msra.mxu0 %v61
    %107 = vmatprep.subr.mxu0 %v64
    %108 = vmatpush1.msra.mxu0 %v63
    %109 = vmatprep.subr.mxu0 %v66
    %110 = vmatpush1.msra.mxu0 %v65
    %111 = vmatprep.subr.mxu0 %v68
    %112 = vmatpush1.msra.mxu0 %v67
    %113 = vmatprep.subr.mxu0 %v70
    %114 = vmatpush1.msra.mxu0 %v69
    %115 = vmatprep.subr.mxu0 %v72
    %116 = vmatpush1.msra.mxu0 %v71
    %117 = vmatprep.subr.mxu0 %v74
    %118 = vmatpush1.msra.mxu0 %v73
    %119 = vmatprep.subr.mxu0 %v76
    %120 = vmatpush1.msra.mxu0 %v75
    %121 = vmatprep.subr.mxu0 %v78
    %122 = vmatpush1.msra.mxu0 %v77
    %123 = vmatprep.subr.mxu0 %v80
    %124 = vmatpush1.msra.mxu0 %v79
    %125 = vmatprep.subr.mxu0 %v82
    %126 = vmatpush1.msra.mxu0 %v81
    %127 = vmatprep.subr.mxu0 0.0
    %128 = vmatpush1.msra.mxu0 0.0
    %129 = vmatprep.subr.mxu0 0.0
    %130 = vmatpush1.msra.mxu0 0.0
    %131 = vmatprep.subr.mxu0 0.0
    %132 = vmatpush1.msra.mxu0 0.0
    %133 = vmatprep.subr.mxu0 0.0
    %134 = vmatpush1.msra.mxu0 0.0
    %135 = vmatprep.subr.mxu0 0.0
    %136 = vmatpush1.msra.mxu0 0.0
    %137 = vmatprep.subr.mxu0 0.0
    %138 = vmatpush1.msra.mxu0 0.0
    %139 = vmatprep.subr.mxu0 0.0
    %140 = vmatpush1.msra.mxu0 0.0
    %141 = vmatprep.subr.mxu0 0.0
    %142 = vmatpush1.msra.mxu0 0.0
    %143 = vmatprep.subr.mxu0 0.0
    %144 = vmatpush1.msra.mxu0 0.0
    %145 = vmatprep.subr.mxu0 0.0
    %146 = vmatpush1.msra.mxu0 0.0
    %147 = vmatprep.subr.mxu0 0.0
    %148 = vmatpush1.msra.mxu0 0.0
    %149 = vmatprep.subr.mxu0 0.0
    %150 = vmatpush1.msra.mxu0 0.0
    %151 = vmatprep.subr.mxu0 0.0
    %152 = vmatpush1.msra.mxu0 0.0
    %153 = vmatprep.subr.mxu0 0.0
    %154 = vmatpush1.msra.mxu0 0.0
    %155 = vmatprep.subr.mxu0 0.0
    %156 = vmatpush1.msra.mxu0 0.0
    %157 = vmatprep.subr.mxu0 0.0
    %158 = vmatpush1.msra.mxu0 0.0
    %159 = vmatprep.mubr.f32.mxu0 0.0
    %160 = vmatmul.mubr.f32.gmra.mrb[0].mxu0 %v43
    %v161 = vpop.f32.mrb[0].mxu0
    %v162 = vadd.f32 %v88, %v161
    %v163 = vpop.f32.mrb[0].mxu0
    %v164 = vadd.f32 %v92, %v163
    %165 = vmatprep.mubr.f32.mxu0 0.0
    %166 = vmatmul.mubr.f32.gmra.mrb[0].mxu0 %v44
    %v167 = vpop.f32.mrb[0].mxu0
    %v168 = vadd.f32 %v88, %v167
    %v169 = vpop.f32.mrb[0].mxu0
    %v170 = vadd.f32 %v92, %v169
    %171 = vmatprep.mubr.f32.mxu0 0.0
    %172 = vmatmul.mubr.f32.gmra.mrb[0].mxu0 %v45
    %v173 = vpop.f32.mrb[0].mxu0
    %v174 = vadd.f32 %v88, %v173
    %v175 = vpop.f32.mrb[0].mxu0
    %v176 = vadd.f32 %v92, %v175
    %177 = vmatprep.mubr.f32.mxu0 0.0
    %178 = vmatmul.mubr.f32.gmra.mrb[0].mxu0 %v46
    %v179 = vpop.f32.mrb[0].mxu0
    %v180 = vadd.f32 %v88, %v179
    %v181 = vpop.f32.mrb[0].mxu0
    %v182 = vadd.f32 %v92, %v181
    %183 = vmatprep.mubr.f32.mxu0 0.0
    %184 = vmatmul.mubr.f32.gmra.mrb[0].mxu0 %v47
    %v185 = vpop.f32.mrb[0].mxu0
    %v186 = vadd.f32 %v88, %v185
    %v187 = vpop.f32.mrb[0].mxu0
    %v188 = vadd.f32 %v92, %v187
    %189 = vmatprep.mubr.f32.mxu0 0.0
    %190 = vmatmul.mubr.f32.gmra.mrb[0].mxu0 %v48
    %v191 = vpop.f32.mrb[0].mxu0
    %v192 = vadd.f32 %v88, %v191
    %v193 = vpop.f32.mrb[0].mxu0
    %v194 = vadd.f32 %v92, %v193
    %195 = vmatprep.mubr.f32.mxu0 0.0
    %196 = vmatmul.mubr.f32.gmra.mrb[0].mxu0 %v49
    %v197 = vpop.f32.mrb[0].mxu0
    %v198 = vadd.f32 %v88, %v197
    %v199 = vpop.f32.mrb[0].mxu0
    %v200 = vadd.f32 %v92, %v199
    %201 = vmatprep.mubr.f32.mxu0 0.0
    %202 = vmatmul.mubr.f32.gmra.mrb[0].mxu0 %v50
    %v203 = vpop.f32.mrb[0].mxu0
    %v204 = vadd.f32 %v88, %v203
    %v205 = vpop.f32.mrb[0].mxu0
    %v206 = vadd.f32 %v92, %v205
    %207 = vdwg.mxu0
    %v208 = vmax.f32 %v162, 0.0
    %v209 = vmax.f32 %v168, 0.0
    %v210 = vmax.f32 %v174, 0.0
    %v211 = vmax.f32 %v180, 0.0
    %v212 = vmax.f32 %v186, 0.0
    %v213 = vmax.f32 %v192, 0.0
    %v214 = vmax.f32 %v198, 0.0
    %v215 = vmax.f32 %v204, 0.0
    %v216 = vxor.u32 %v164, 2147483648
    %v217 = vxor.u32 %v170, 2147483648
    %v218 = vxor.u32 %v176, 2147483648
    %v219 = vxor.u32 %v182, 2147483648
    %v220 = vxor.u32 %v188, 2147483648
    %v221 = vxor.u32 %v194, 2147483648
    %v222 = vxor.u32 %v200, 2147483648
    %v223 = vxor.u32 %v206, 2147483648
    %v224 = vmul.f32 %v216, 1.442695
    %v225 = vpow.pop %v224
    %v226 = vmul.f32 %v217, 1.442695
    %v227 = vpow.pop %v226
    %v228 = vmul.f32 %v218, 1.442695
    %v229 = vpow.pop %v228
    %v230 = vmul.f32 %v219, 1.442695
    %v231 = vpow.pop %v230
    %v232 = vmul.f32 %v220, 1.442695
    %v233 = vpow.pop %v232
    %v234 = vmul.f32 %v221, 1.442695
    %v235 = vpow.pop %v234
    %v236 = vmul.f32 %v222, 1.442695
    %v237 = vpow.pop %v236
    %v238 = vmul.f32 %v223, 1.442695
    %v239 = vpow.pop %v238
    %v240 = vadd.f32 %v225, 1.0
    %v241 = vadd.f32 %v227, 1.0
    %v242 = vadd.f32 %v229, 1.0
    %v243 = vadd.f32 %v231, 1.0
    %v244 = vadd.f32 %v233, 1.0
    %v245 = vadd.f32 %v235, 1.0
    %v246 = vadd.f32 %v237, 1.0
    %v247 = vadd.f32 %v239, 1.0
    %v248 = vrcp.pop %v240
    %v249 = vmul.f32 1.0, %v248
    %v250 = vrcp.pop %v241
    %v251 = vmul.f32 1.0, %v250
    %v252 = vrcp.pop %v242
    %v253 = vmul.f32 1.0, %v252
    %v254 = vrcp.pop %v243
    %v255 = vmul.f32 1.0, %v254
    %v256 = vrcp.pop %v244
    %v257 = vmul.f32 1.0, %v256
    %v258 = vrcp.pop %v245
    %v259 = vmul.f32 1.0, %v258
    %v260 = vrcp.pop %v246
    %v261 = vmul.f32 1.0, %v260
    %v262 = vrcp.pop %v247
    %v263 = vmul.f32 1.0, %v262
    %v264 = vmul.f32 %v249, %v208
    %v265 = vmul.f32 %v251, %v209
    %v266 = vmul.f32 %v253, %v210
    %v267 = vmul.f32 %v255, %v211
    %v268 = vmul.f32 %v257, %v212
    %v269 = vmul.f32 %v259, %v213
    %v270 = vmul.f32 %v261, %v214
    %v271 = vmul.f32 %v263, %v215
    %v272 = vsub.f32 1.0, %v249
    %v273 = vsub.f32 1.0, %v251
    %v274 = vsub.f32 1.0, %v253
    %v275 = vsub.f32 1.0, %v255
    %v276 = vsub.f32 1.0, %v257
    %v277 = vsub.f32 1.0, %v259
    %v278 = vsub.f32 1.0, %v261
    %v279 = vsub.f32 1.0, %v263
    %v280 = vmul.f32 %v272, %v43
    %v281 = vmul.f32 %v273, %v44
    %v282 = vmul.f32 %v274, %v45
    %v283 = vmul.f32 %v275, %v46
    %v284 = vmul.f32 %v276, %v47
    %v285 = vmul.f32 %v277, %v48
    %v286 = vmul.f32 %v278, %v49
    %v287 = vmul.f32 %v279, %v50
    %v288 = vadd.f32 %v264, %v280
    %v289 = vadd.f32 %v265, %v281
    %v290 = vadd.f32 %v266, %v282
    %v291 = vadd.f32 %v267, %v283
    %v292 = vadd.f32 %v268, %v284
    %v293 = vadd.f32 %v269, %v285
    %v294 = vadd.f32 %v270, %v286
    %v295 = vadd.f32 %v271, %v287
    %296 = vst [vmem:[#allocation7] sm:$0xff] %v288
    %297 = vst [vmem:[#allocation7 + $0x8] sm:$0xff] %v289
    %298 = vst [vmem:[#allocation7 + $0x10] sm:$0xff] %v290
    %299 = vst [vmem:[#allocation7 + $0x18] sm:$0xff] %v291
    %300 = vst [vmem:[#allocation7 + $0x20] sm:$0xff] %v292
    %301 = vst [vmem:[#allocation7 + $0x28] sm:$0xff] %v293
    %302 = vst [vmem:[#allocation7 + $0x30] sm:$0xff] %v294
    %303 = vst [vmem:[#allocation7 + $0x38] sm:$0xff] %v295
    // Predicated region
    $region22: #{tpu_custom_call.1} parent=1 // pred_check
      _
    $region23: #{tpu_custom_call.1} parent=1 // pred_check_branch
      %305 = sbr.rel (0) target = $region25
    $region24: #{tpu_custom_call.1} parent=1 // pred_region
      %s307 = ssub.s32 1024, 1024
      %308 = vsyncadd [#allocation4], %s307
      %s309 = sshll.u32 [#allocation7], 4
      %s310 = int_to_ptr.vmem [resolvable:$true] %s309
      %315 = dma.vmem_to_hbm [thread:$0]  %s310, 1024, %s3, [#allocation4], 128, 128, 8
    $region25: #{tpu_custom_call.1} parent=1 // pred_fallthru
      _
    // Predicated region
    $region26: #{tpu_custom_call.1} parent=1 // pred_check
      _
    $region27: #{tpu_custom_call.1} parent=1 // pred_check_branch
      %317 = sbr.rel (0) target = $region29
    $region28: #{tpu_custom_call.1} parent=1 // pred_region
      %318 = dma.done [#allocation4], 1024
    $region29: #{tpu_custom_call.1} parent=1 // pred_fallthru
      _
    %319 = vsyncpa [#allocation3], 1
    %320 = vsyncpa [#allocation6], 1
    %321 = vsyncpa [#allocation4], 1

</llo_original>
